<compile_context>
chip_gen: v7x
topology: tpu7x:2x2x1
jax: 0.10.0
libtpu: 0.0.40
codegen_flags: <defaults>
</compile_context>

<pallas_src>
import functools

import jax
import jax.numpy as jnp
from jax.experimental import pallas as pl
from jax.experimental.pallas import tpu as pltpu

H1 = 512   # lin1 output width
H2 = 128   # lin2 output width


def _round_up(x, m):
    return ((x + m - 1) // m) * m


# ----------------------------------------------------------------------------
# fused 3-layer MLP kernel: one row-tile of x per grid step, weights resident
# ----------------------------------------------------------------------------
def discriminator_kernel(x_ref, w1_ref, b1_ref, w2_ref, b2_ref, w3_ref, b3_ref,
                         o_ref):
    # x_ref : (TM, Kp)   f32   (native dtype; cast to bf16 at the MXU operand)
    # w1_ref: (Kp, 512)  bf16  (pre-cast/padded once, resident across the grid)
    # b1_ref: (1, 512)   f32
    # w2_ref: (512, 128) bf16
    # b2_ref: (1, 128)   f32
    # w3_ref: (1, 128)   f32   (final projection as a row vector)
    # b3_ref: (1, 1)     f32
    # o_ref : (1, TM)    f32   (lane-dense output tile)
    x_bf = x_ref[...].astype(jnp.bfloat16)
    y1 = jnp.dot(x_bf, w1_ref[...], preferred_element_type=jnp.float32)
    y1 = jnp.maximum(y1 + b1_ref[...], 0.0)                        # ReLU(lin1)

    y2 = jnp.dot(y1.astype(jnp.bfloat16), w2_ref[...],
                 preferred_element_type=jnp.float32)
    y2 = jnp.maximum(y2 + b2_ref[...], 0.0)                        # ReLU(lin2)

    # lin3 (output width 1) computed lane-dense: contract w3 (1,128) against the
    # last axis of y2 (TM,128) -> (1, TM).  Keeps the sigmoid + store on full
    # vregs and the output DMA contiguous.
    z = jax.lax.dot_general(w3_ref[...], y2, (((1,), (1,)), ((), ())),
                            preferred_element_type=jnp.float32)
    z = z + b3_ref[...]
    # sigmoid(x) == 0.5*(tanh(x/2)+1): single EUP transcendental, stable.
    o_ref[...] = 0.5 * (jnp.tanh(0.5 * z) + 1.0)                   # Sigmoid(lin3)


# ----------------------------------------------------------------------------
# one-time parameter packing (done at load time, NOT per forward call)
# ----------------------------------------------------------------------------
def prepare_params(params, in_feat):
    """Cast weights to bf16 and zero-pad w1's contraction dim to a lane multiple.

    Doing this once here removes the per-call wrapper passes that previously
    re-read ~4.25 MiB of f32 weights and re-wrote ~2.2 MiB of bf16 every step.
    """
    k_pad = _round_up(in_feat, 128)
    w1 = params["w1"].astype(jnp.bfloat16)
    if k_pad != in_feat:
        w1 = jnp.pad(w1, ((0, k_pad - in_feat), (0, 0)))  # zeros keep dot exact
    return dict(
        w1=w1,                                                    # (Kp, 512) bf16
        b1=params["b1"].reshape(1, H1).astype(jnp.float32),
        w2=params["w2"].astype(jnp.bfloat16),                     # (512, 128) bf16
        b2=params["b2"].reshape(1, H2).astype(jnp.float32),
        w3=params["w3"].reshape(1, H2).astype(jnp.float32),
        b3=params["b3"].reshape(1, 1).astype(jnp.float32),
    )


# ----------------------------------------------------------------------------
# wrapper: adaptive row tiling, lane-dense output, row-tiled pallas_call
# ----------------------------------------------------------------------------
@functools.partial(jax.jit, static_argnames=("tm_max",))
def discriminator_forward(x, prepped, *, tm_max=256):
    n, in_feat = x.shape
    k_pad, h1 = prepped["w1"].shape
    assert h1 == H1
    assert tm_max % 128 == 0  # lane alignment of the output tile when grid > 1

    # Adaptive row tile: smallest 8-aligned tile covering small batches, capped
    # at tm_max for large ones (raise tm_max + vmem_limit_bytes for huge batches
    # on single-TC v5e/v6e; keep grid >= 2 on v7x for megacore).
    n8 = _round_up(n, 8)
    tm = n8 if n8 <= tm_max else tm_max
    n_pad = _round_up(n8, tm)
    grid = (n_pad // tm,)

    # Only touch x when padding is actually needed (skipped when aligned).
    if n_pad != n or k_pad != in_feat:
        x = jnp.pad(x, ((0, n_pad - n), (0, k_pad - in_feat)))

    x_bytes = n_pad * k_pad * x.dtype.itemsize
    w_bytes = (prepped["w1"].size + prepped["w2"].size) * 2 \
              + (H1 + H2 + H2 + 1) * 4
    cost = pl.CostEstimate(
        flops=2 * n_pad * (k_pad * H1 + H1 * H2 + H2),
        transcendentals=n_pad,
        bytes_accessed=x_bytes + w_bytes + n_pad * 4,
    )

    out = pl.pallas_call(
        discriminator_kernel,
        out_shape=jax.ShapeDtypeStruct((1, n_pad), jnp.float32),
        grid=grid,
        in_specs=[
            pl.BlockSpec((tm, k_pad), lambda i: (i, 0)),   # x tile (pipelined)
            pl.BlockSpec((k_pad, H1), lambda i: (0, 0)),   # weights stay resident
            pl.BlockSpec((1, H1), lambda i: (0, 0)),
            pl.BlockSpec((H1, H2), lambda i: (0, 0)),
            pl.BlockSpec((1, H2), lambda i: (0, 0)),
            pl.BlockSpec((1, H2), lambda i: (0, 0)),
            pl.BlockSpec((1, 1), lambda i: (0, 0)),
        ],
        out_specs=pl.BlockSpec((1, tm), lambda i: (0, i)), # lane-dense output
        compiler_params=pltpu.CompilerParams(
            dimension_semantics=("parallel",)),            # megacore row-sharding
        cost_estimate=cost,
    )(x, prepped["w1"], prepped["b1"], prepped["w2"], prepped["b2"],
      prepped["w3"], prepped["b3"])

    return out.reshape(-1)[:n].reshape(n, 1)


# ----------------------------------------------------------------------------
# parameter init (PyTorch nn.Linear default: U(-1/sqrt(fan_in), 1/sqrt(fan_in)))
# ----------------------------------------------------------------------------
def init_params(key, in_feat):
    def linear(k, fan_in, fan_out):
        kw, kb = jax.random.split(k)
        bound = float(fan_in) ** -0.5
        w = jax.random.uniform(kw, (fan_in, fan_out), jnp.float32, -bound, bound)
        b = jax.random.uniform(kb, (fan_out,), jnp.float32, -bound, bound)
        return w, b

    k1, k2, k3 = jax.random.split(key, 3)
    w1, b1 = linear(k1, in_feat, H1)
    w2, b2 = linear(k2, H1, H2)
    w3, b3 = linear(k3, H2, 1)
    return {"w1": w1, "b1": b1,
            "w2": w2, "b2": b2,
            "w3": w3.reshape(H2), "b3": b3.reshape(())}


# pure-JAX f32 reference (the original module's eval forward)
def discriminator_ref(x, params):
    y = jnp.maximum(x @ params["w1"] + params["b1"], 0.0)
    y = jnp.maximum(y @ params["w2"] + params["b2"], 0.0)
    z = y @ params["w3"].reshape(H2, 1) + params["b3"]
    return jax.nn.sigmoid(z)


# ----------------------------------------------------------------------------
# main
# ----------------------------------------------------------------------------
if __name__ == "__main__":
    key = jax.random.PRNGKey(0)
    k_x, k_p, k_x2 = jax.random.split(key, 3)

    # Small shapes: batch of visual-model features (eval-mode Discriminator).
    batch, in_feat = 64, 256
    x = jax.random.normal(k_x, (batch, in_feat), jnp.float32)
    params = init_params(k_p, in_feat)
    prepped = prepare_params(params, in_feat)   # one-time weight cast/pad

    probs = discriminator_forward(x, prepped)
    jax.block_until_ready(probs)

    assert probs.shape == (batch, 1)
    assert bool(jnp.all((probs >= 0.0) & (probs <= 1.0)))
    ref = discriminator_ref(x, params)
    max_err = float(jnp.max(jnp.abs(probs - ref)))
    assert max_err < 2e-2, f"max |pallas - ref| = {max_err}"

    # Second call exercises the multi-tile (grid>1) lane-dense output path and
    # the ragged-batch row padding (n=300 -> tm=256, grid=(2,)).
    x2 = jax.random.normal(k_x2, (300, in_feat), jnp.float32)
    probs2 = discriminator_forward(x2, prepped)
    jax.block_until_ready(probs2)
    ref2 = discriminator_ref(x2, params)
    max_err2 = float(jnp.max(jnp.abs(probs2 - ref2)))
    assert probs2.shape == (300, 1)
    assert max_err2 < 2e-2, f"max |pallas - ref| (ragged) = {max_err2}"

    print("KERNEL_OK")
</pallas_src>

<mosaic_0001>
module attributes {stable_mosaic.version = 11 : i64} {
  func.func @discriminator_kernel(%arg0: i32, %arg1: memref<64x256xf32, #tpu.memory_space<vmem>>, %arg2: memref<256x512xbf16, #tpu.memory_space<vmem>>, %arg3: memref<1x512xf32, #tpu.memory_space<vmem>>, %arg4: memref<512x128xbf16, #tpu.memory_space<vmem>>, %arg5: memref<1x128xf32, #tpu.memory_space<vmem>>, %arg6: memref<1x128xf32, #tpu.memory_space<vmem>>, %arg7: memref<1x1xf32, #tpu.memory_space<vmem>>, %arg8: memref<1x64xf32, #tpu.memory_space<vmem>>) attributes {dimension_semantics = [#tpu.dimension_semantics<parallel>], iteration_bounds = array<i64: 1>, scalar_prefetch = 0 : i64, scratch_operands = 0 : i64, tpu.core_type = #tpu.core_type<tc>, window_params = [{transform_indices = @transform_0, window_bounds = array<i64: 64, 256>}, {pipeline_mode = #tpu.pipeline_mode<synchronous>, transform_indices = @transform_1, window_bounds = array<i64: 256, 512>}, {pipeline_mode = #tpu.pipeline_mode<synchronous>, transform_indices = @transform_2, window_bounds = array<i64: 1, 512>}, {pipeline_mode = #tpu.pipeline_mode<synchronous>, transform_indices = @transform_3, window_bounds = array<i64: 512, 128>}, {pipeline_mode = #tpu.pipeline_mode<synchronous>, transform_indices = @transform_4, window_bounds = array<i64: 1, 128>}, {pipeline_mode = #tpu.pipeline_mode<synchronous>, transform_indices = @transform_5, window_bounds = array<i64: 1, 128>}, {pipeline_mode = #tpu.pipeline_mode<synchronous>, transform_indices = @transform_6, window_bounds = array<i64: 1, 1>}, {transform_indices = @transform_7, window_bounds = array<i64: 1, 64>}]} {
    %c0 = arith.constant 0 : index
    %c0_0 = arith.constant 0 : index
    %0 = vector.load %arg1[%c0, %c0_0] : memref<64x256xf32, #tpu.memory_space<vmem>>, vector<64x256xf32>
    %1 = arith.truncf %0 : vector<64x256xf32> to vector<64x256xbf16>
    %c0_1 = arith.constant 0 : index
    %c0_2 = arith.constant 0 : index
    %2 = vector.load %arg2[%c0_1, %c0_2] : memref<256x512xbf16, #tpu.memory_space<vmem>>, vector<256x512xbf16>
    %cst = arith.constant dense<0.000000e+00> : vector<64x512xf32>
    %3 = tpu.matmul %1, %2, %cst {dimension_numbers = #tpu.dot_dimension_numbers<[1], [0], [0], [1], [0, 0, 1, 1], [], []>} : vector<64x256xbf16>, vector<256x512xbf16>, vector<64x512xf32> -> vector<64x512xf32>
    %c0_3 = arith.constant 0 : index
    %c0_4 = arith.constant 0 : index
    %4 = vector.load %arg3[%c0_3, %c0_4] : memref<1x512xf32, #tpu.memory_space<vmem>>, vector<1x512xf32>
    %5 = vector.broadcast %4 : vector<1x512xf32> to vector<64x512xf32>
    %6 = arith.addf %3, %5 : vector<64x512xf32>
    %cst_5 = arith.constant 0.000000e+00 : f32
    %7 = vector.broadcast %cst_5 : f32 to vector<64x512xf32>
    %8 = arith.maximumf %6, %7 : vector<64x512xf32>
    %9 = arith.truncf %8 : vector<64x512xf32> to vector<64x512xbf16>
    %c0_6 = arith.constant 0 : index
    %c0_7 = arith.constant 0 : index
    %10 = vector.load %arg4[%c0_6, %c0_7] : memref<512x128xbf16, #tpu.memory_space<vmem>>, vector<512x128xbf16>
    %cst_8 = arith.constant dense<0.000000e+00> : vector<64x128xf32>
    %11 = tpu.matmul %9, %10, %cst_8 {dimension_numbers = #tpu.dot_dimension_numbers<[1], [0], [0], [1], [0, 0, 1, 1], [], []>} : vector<64x512xbf16>, vector<512x128xbf16>, vector<64x128xf32> -> vector<64x128xf32>
    %c0_9 = arith.constant 0 : index
    %c0_10 = arith.constant 0 : index
    %12 = vector.load %arg5[%c0_9, %c0_10] : memref<1x128xf32, #tpu.memory_space<vmem>>, vector<1x128xf32>
    %13 = vector.broadcast %12 : vector<1x128xf32> to vector<64x128xf32>
    %14 = arith.addf %11, %13 : vector<64x128xf32>
    %cst_11 = arith.constant 0.000000e+00 : f32
    %15 = vector.broadcast %cst_11 : f32 to vector<64x128xf32>
    %16 = arith.maximumf %14, %15 : vector<64x128xf32>
    %c0_12 = arith.constant 0 : index
    %c0_13 = arith.constant 0 : index
    %17 = vector.load %arg6[%c0_12, %c0_13] : memref<1x128xf32, #tpu.memory_space<vmem>>, vector<1x128xf32>
    %cst_14 = arith.constant dense<0.000000e+00> : vector<1x64xf32>
    %18 = tpu.matmul %17, %16, %cst_14 {dimension_numbers = #tpu.dot_dimension_numbers<[1], [1], [0], [0], [0, 0, 1, 0], [], []>} : vector<1x128xf32>, vector<64x128xf32>, vector<1x64xf32> -> vector<1x64xf32>
    %c0_15 = arith.constant 0 : index
    %c0_16 = arith.constant 0 : index
    %19 = vector.load %arg7[%c0_15, %c0_16] : memref<1x1xf32, #tpu.memory_space<vmem>>, vector<1x1xf32>
    %20 = vector.broadcast %19 : vector<1x1xf32> to vector<1x64xf32>
    %21 = arith.addf %18, %20 : vector<1x64xf32>
    %cst_17 = arith.constant 5.000000e-01 : f32
    %22 = vector.broadcast %cst_17 : f32 to vector<1x64xf32>
    %23 = arith.mulf %22, %21 : vector<1x64xf32>
    %24 = math.tanh %23 : vector<1x64xf32>
    %cst_18 = arith.constant 1.000000e+00 : f32
    %25 = vector.broadcast %cst_18 : f32 to vector<1x64xf32>
    %26 = arith.addf %24, %25 : vector<1x64xf32>
    %cst_19 = arith.constant 5.000000e-01 : f32
    %27 = vector.broadcast %cst_19 : f32 to vector<1x64xf32>
    %28 = arith.mulf %27, %26 : vector<1x64xf32>
    %c0_20 = arith.constant 0 : index
    %c0_21 = arith.constant 0 : index
    %29 = vector.load %arg8[%c0_20, %c0_21] : memref<1x64xf32, #tpu.memory_space<vmem>>, vector<1x64xf32>
    tpu.vector_store %arg8[%c0_20, %c0_21], %28 {strides = array<i32>} : memref<1x64xf32, #tpu.memory_space<vmem>>, vector<1x64xf32>,
    return
  }
  func.func @transform_0(%arg0: i32) -> (i32, i32) {
    %c0_i32 = arith.constant 0 : i32
    %c0_i32_0 = arith.constant 0 : i32
    return %arg0, %c0_i32 : i32, i32
  }
  func.func @transform_1(%arg0: i32) -> (i32, i32) {
    %c0_i32 = arith.constant 0 : i32
    %c0_i32_0 = arith.constant 0 : i32
    %c0_i32_1 = arith.constant 0 : i32
    return %c0_i32, %c0_i32_0 : i32, i32
  }
  func.func @transform_2(%arg0: i32) -> (i32, i32) {
    %c0_i32 = arith.constant 0 : i32
    %c0_i32_0 = arith.constant 0 : i32
    %c0_i32_1 = arith.constant 0 : i32
    return %c0_i32, %c0_i32_0 : i32, i32
  }
  func.func @transform_3(%arg0: i32) -> (i32, i32) {
    %c0_i32 = arith.constant 0 : i32
    %c0_i32_0 = arith.constant 0 : i32
    %c0_i32_1 = arith.constant 0 : i32
    return %c0_i32, %c0_i32_0 : i32, i32
  }
  func.func @transform_4(%arg0: i32) -> (i32, i32) {
    %c0_i32 = arith.constant 0 : i32
    %c0_i32_0 = arith.constant 0 : i32
    %c0_i32_1 = arith.constant 0 : i32
    return %c0_i32, %c0_i32_0 : i32, i32
  }
  func.func @transform_5(%arg0: i32) -> (i32, i32) {
    %c0_i32 = arith.constant 0 : i32
    %c0_i32_0 = arith.constant 0 : i32
    %c0_i32_1 = arith.constant 0 : i32
    return %c0_i32, %c0_i32_0 : i32, i32
  }
  func.func @transform_6(%arg0: i32) -> (i32, i32) {
    %c0_i32 = arith.constant 0 : i32
    %c0_i32_0 = arith.constant 0 : i32
    %c0_i32_1 = arith.constant 0 : i32
    return %c0_i32, %c0_i32_0 : i32, i32
  }
  func.func @transform_7(%arg0: i32) -> (i32, i32) {
    %c0_i32 = arith.constant 0 : i32
    %c0_i32_0 = arith.constant 0 : i32
    return %c0_i32, %arg0 : i32, i32
  }
}

</mosaic_0001>

<llo_original>
// kernel: discriminator_forward.1
$region0: #{discriminator_forward.1}
  #allocation0 [shape = 'u32[]', space=smem, size = 0x4, offset = 0x4, fixed_abs, tag = 'smem constant byte address 0x4 - core index']
  #allocation1 [shape = 'u32[144,128]{1,0:T(1,128)}', space=vmem, size = 0x12000, scoped, tag = 'internal scratch']
  #allocation2 [shape = 'f32[1,1]{1,0:T(1,128)S(1)}', space=vmem, size = 0x200, scoped, tag = 'scoped memory for discriminator_forward.1']
  %s0 = inlined_call_operand.hbm [shape: f32[64,256], index: 0, kind: input, shape index: {}]
  %s1 = inlined_call_operand.hbm [shape: bf16[256,512], index: 1, kind: input, shape index: {}]
  %s2 = inlined_call_operand.vmem [shape: f32[1,512], index: 2, kind: input, shape index: {}]
  %s3 = inlined_call_operand.hbm [shape: bf16[512,128], index: 3, kind: input, shape index: {}]
  %s4 = inlined_call_operand.vmem [shape: f32[1,128], index: 4, kind: input, shape index: {}]
  %s5 = inlined_call_operand.vmem [shape: f32[1,128], index: 5, kind: input, shape index: {}]
  %s6 = inlined_call_operand.<no memory space> [shape: f32[1,1], index: 6, kind: input, shape index: {}]
  %s7 = inlined_call_operand.hbm [shape: f32[1,64], index: 7, kind: output, shape index: {}]
  %s8 = sld [smem:[#allocation0]]
  $region50: #{discriminator_forward.1} parent=0
    _
  %s10 = ssub.s32 1, %s8
  %s11 = scalar_select 0, %s10, %s8
  %v12 = vstv %s6
  %13 = vst [vmem:[#allocation2] sm:$0x1] %v12
  $region1: #{discriminator_forward.1} parent=0
    #allocation3 [shape = 'u8[65536]{0}', space=vmem, size = 0x10000, scoped, tag = 'input window, operand 0, single buffered']
    #allocation4 [shape = 's32[1]{0}', space=sflag, size = 0x4, scoped, tag = 'scoped memory for discriminator_forward.1']
    #allocation5 [shape = 's32[1]{0}', space=sflag, size = 0x4, scoped, tag = 'scoped memory for discriminator_forward.1']
    #allocation6 [shape = 'u8[262144]{0}', space=vmem, size = 0x40000, scoped, tag = 'input window, operand 1, single buffered']
    #allocation7 [shape = 's32[1]{0}', space=sflag, size = 0x4, scoped, tag = 'scoped memory for discriminator_forward.1']
    #allocation8 [shape = 'u8[131072]{0}', space=vmem, size = 0x20000, scoped, tag = 'input window, operand 3, single buffered']
    #allocation9 [shape = 'u8[512]{0}', space=vmem, size = 0x400, scoped, tag = 'output window, operand 0, single buffered']
    %14 = vsyncpa [#allocation4], 0
    %15 = vsyncpa [#allocation7], 0
    %16 = vsyncpa [#allocation5], 0
    // Predicated region
    $region2: #{discriminator_forward.1} parent=1 // pred_check
      _
    $region3: #{discriminator_forward.1} parent=1 // pred_check_branch
      %18 = sbr.rel (0) target = $region5
    $region4: #{discriminator_forward.1} parent=1 // pred_region
      %s20 = ssub.s32 2048, 2048
      %21 = vsyncadd [#allocation4], %s20
      %s22 = sshll.u32 [#allocation3], 4
      %s23 = int_to_ptr.vmem [resolvable:$true] %s22
      %28 = dma.hbm_to_vmem [thread:$0]  %s0, 2048, %s23, [#allocation4], 256, 256, 16
    $region5: #{discriminator_forward.1} parent=1 // pred_fallthru
      _
    // Predicated region
    $region6: #{discriminator_forward.1} parent=1 // pred_check
      _
    $region7: #{discriminator_forward.1} parent=1 // pred_check_branch
      %30 = sbr.rel (0) target = $region9
    $region8: #{discriminator_forward.1} parent=1 // pred_region
      %s32 = ssub.s32 8192, 8192
      %33 = vsyncadd [#allocation7], %s32
      %s34 = sshll.u32 [#allocation6], 4
      %s35 = int_to_ptr.vmem [resolvable:$true] %s34
      %40 = dma.hbm_to_vmem [thread:$0]  %s1, 8192, %s35, [#allocation7], 256, 256, 16
    $region9: #{discriminator_forward.1} parent=1 // pred_fallthru
      _
    // Predicated region
    $region10: #{discriminator_forward.1} parent=1 // pred_check
      _
    $region11: #{discriminator_forward.1} parent=1 // pred_check_branch
      %42 = sbr.rel (0) target = $region13
    $region12: #{discriminator_forward.1} parent=1 // pred_region
      _
    $region13: #{discriminator_forward.1} parent=1 // pred_fallthru
      _
    // Predicated region
    $region14: #{discriminator_forward.1} parent=1 // pred_check
      _
    $region15: #{discriminator_forward.1} parent=1 // pred_check_branch
      %44 = sbr.rel (0) target = $region17
    $region16: #{discriminator_forward.1} parent=1 // pred_region
      %s46 = ssub.s32 4096, 4096
      %47 = vsyncadd [#allocation7], %s46
      %s48 = sshll.u32 [#allocation8], 4
      %s49 = int_to_ptr.vmem [resolvable:$true] %s48
      %54 = dma.hbm_to_vmem [thread:$0]  %s3, 4096, %s49, [#allocation7], 64, 64, 4
    $region17: #{discriminator_forward.1} parent=1 // pred_fallthru
      _
    // Predicated region
    $region18: #{discriminator_forward.1} parent=1 // pred_check
      _
    $region19: #{discriminator_forward.1} parent=1 // pred_check_branch
      %56 = sbr.rel (0) target = $region21
    $region20: #{discriminator_forward.1} parent=1 // pred_region
      _
    $region21: #{discriminator_forward.1} parent=1 // pred_fallthru
      _
    // Predicated region
    $region22: #{discriminator_forward.1} parent=1 // pred_check
      _
    $region23: #{discriminator_forward.1} parent=1 // pred_check_branch
      %58 = sbr.rel (0) target = $region25
    $region24: #{discriminator_forward.1} parent=1 // pred_region
      _
    $region25: #{discriminator_forward.1} parent=1 // pred_fallthru
      _
    // Predicated region
    $region26: #{discriminator_forward.1} parent=1 // pred_check
      _
    $region27: #{discriminator_forward.1} parent=1 // pred_check_branch
      %60 = sbr.rel (0) target = $region29
    $region28: #{discriminator_forward.1} parent=1 // pred_region
      _
    $region29: #{discriminator_forward.1} parent=1 // pred_fallthru
      _
    // Predicated region
    $region30: #{discriminator_forward.1} parent=1 // pred_check
      _
    $region31: #{discriminator_forward.1} parent=1 // pred_check_branch
      %62 = sbr.rel (0) target = $region33
    $region32: #{discriminator_forward.1} parent=1 // pred_region
      %63 = dma.done [#allocation4], 2048
    $region33: #{discriminator_forward.1} parent=1 // pred_fallthru
      _
    // Predicated region
    $region34: #{discriminator_forward.1} parent=1 // pred_check
      _
    $region35: #{discriminator_forward.1} parent=1 // pred_check_branch
      %65 = sbr.rel (0) target = $region37
    $region36: #{discriminator_forward.1} parent=1 // pred_region
      %66 = dma.done [#allocation7], 8192
    $region37: #{discriminator_forward.1} parent=1 // pred_fallthru
      _
    // Predicated region
    $region38: #{discriminator_forward.1} parent=1 // pred_check
      _
    $region39: #{discriminator_forward.1} parent=1 // pred_check_branch
      %68 = sbr.rel (0) target = $region41
    $region40: #{discriminator_forward.1} parent=1 // pred_region
      %69 = dma.done [#allocation7], 4096
    $region41: #{discriminator_forward.1} parent=1 // pred_fallthru
      _
    %v71 = vld [vmem:[#allocation3] sm:$0xff]
    %v72 = vld [vmem:[#allocation3 + $0x8] sm:$0xff]
    %v73 = vld [vmem:[#allocation3 + $0x10] sm:$0xff]
    %v74 = vld [vmem:[#allocation3 + $0x18] sm:$0xff]
    %v75 = vld [vmem:[#allocation3 + $0x20] sm:$0xff]
    %v76 = vld [vmem:[#allocation3 + $0x28] sm:$0xff]
    %v77 = vld [vmem:[#allocation3 + $0x30] sm:$0xff]
    %v78 = vld [vmem:[#allocation3 + $0x38] sm:$0xff]
    %v79 = vld [vmem:[#allocation3 + $0x40] sm:$0xff]
    %v80 = vld [vmem:[#allocation3 + $0x48] sm:$0xff]
    %v81 = vld [vmem:[#allocation3 + $0x50] sm:$0xff]
    %v82 = vld [vmem:[#allocation3 + $0x58] sm:$0xff]
    %v83 = vld [vmem:[#allocation3 + $0x60] sm:$0xff]
    %v84 = vld [vmem:[#allocation3 + $0x68] sm:$0xff]
    %v85 = vld [vmem:[#allocation3 + $0x70] sm:$0xff]
    %v86 = vld [vmem:[#allocation3 + $0x78] sm:$0xff]
    %v87 = vpack.c.bf16 %v73, %v71
    %v88 = vpack.c.bf16 %v74, %v72
    %v89 = vpack.c.bf16 %v77, %v75
    %v90 = vpack.c.bf16 %v78, %v76
    %v91 = vpack.c.bf16 %v81, %v79
    %v92 = vpack.c.bf16 %v82, %v80
    %v93 = vpack.c.bf16 %v85, %v83
    %v94 = vpack.c.bf16 %v86, %v84
    %v95 = vld [vmem:[#allocation6] sm:$0xff]
    %v96 = vld [vmem:[#allocation6 + $0x8] sm:$0xff]
    %v97 = vld [vmem:[#allocation6 + $0x10] sm:$0xff]
    %v98 = vld [vmem:[#allocation6 + $0x18] sm:$0xff]
    %v99 = vld [vmem:[#allocation6 + $0x20] sm:$0xff]
    %v100 = vld [vmem:[#allocation6 + $0x28] sm:$0xff]
    %v101 = vld [vmem:[#allocation6 + $0x30] sm:$0xff]
    %v102 = vld [vmem:[#allocation6 + $0x38] sm:$0xff]
    %v103 = vld [vmem:[#allocation6 + $0x40] sm:$0xff]
    %v104 = vld [vmem:[#allocation6 + $0x48] sm:$0xff]
    %v105 = vld [vmem:[#allocation6 + $0x50] sm:$0xff]
    %v106 = vld [vmem:[#allocation6 + $0x58] sm:$0xff]
    %v107 = vld [vmem:[#allocation6 + $0x60] sm:$0xff]
    %v108 = vld [vmem:[#allocation6 + $0x68] sm:$0xff]
    %v109 = vld [vmem:[#allocation6 + $0x70] sm:$0xff]
    %v110 = vld [vmem:[#allocation6 + $0x78] sm:$0xff]
    %v111 = vld [vmem:[#allocation6 + $0x80] sm:$0xff]
    %v112 = vld [vmem:[#allocation6 + $0x88] sm:$0xff]
    %v113 = vld [vmem:[#allocation6 + $0x90] sm:$0xff]
    %v114 = vld [vmem:[#allocation6 + $0x98] sm:$0xff]
    %v115 = vld [vmem:[#allocation6 + $0xa0] sm:$0xff]
    %v116 = vld [vmem:[#allocation6 + $0xa8] sm:$0xff]
    %v117 = vld [vmem:[#allocation6 + $0xb0] sm:$0xff]
    %v118 = vld [vmem:[#allocation6 + $0xb8] sm:$0xff]
    %v119 = vld [vmem:[#allocation6 + $0xc0] sm:$0xff]
    %v120 = vld [vmem:[#allocation6 + $0xc8] sm:$0xff]
    %v121 = vld [vmem:[#allocation6 + $0xd0] sm:$0xff]
    %v122 = vld [vmem:[#allocation6 + $0xd8] sm:$0xff]
    %v123 = vld [vmem:[#allocation6 + $0xe0] sm:$0xff]
    %v124 = vld [vmem:[#allocation6 + $0xe8] sm:$0xff]
    %v125 = vld [vmem:[#allocation6 + $0xf0] sm:$0xff]
    %v126 = vld [vmem:[#allocation6 + $0xf8] sm:$0xff]
    %v127 = vld [vmem:[#allocation6 + $0x100] sm:$0xff]
    %v128 = vld [vmem:[#allocation6 + $0x108] sm:$0xff]
    %v129 = vld [vmem:[#allocation6 + $0x110] sm:$0xff]
    %v130 = vld [vmem:[#allocation6 + $0x118] sm:$0xff]
    %v131 = vld [vmem:[#allocation6 + $0x120] sm:$0xff]
    %v132 = vld [vmem:[#allocation6 + $0x128] sm:$0xff]
    %v133 = vld [vmem:[#allocation6 + $0x130] sm:$0xff]
    %v134 = vld [vmem:[#allocation6 + $0x138] sm:$0xff]
    %v135 = vld [vmem:[#allocation6 + $0x140] sm:$0xff]
    %v136 = vld [vmem:[#allocation6 + $0x148] sm:$0xff]
    %v137 = vld [vmem:[#allocation6 + $0x150] sm:$0xff]
    %v138 = vld [vmem:[#allocation6 + $0x158] sm:$0xff]
    %v139 = vld [vmem:[#allocation6 + $0x160] sm:$0xff]
    %v140 = vld [vmem:[#allocation6 + $0x168] sm:$0xff]
    %v141 = vld [vmem:[#allocation6 + $0x170] sm:$0xff]
    %v142 = vld [vmem:[#allocation6 + $0x178] sm:$0xff]
    %v143 = vld [vmem:[#allocation6 + $0x180] sm:$0xff]
    %v144 = vld [vmem:[#allocation6 + $0x188] sm:$0xff]
    %v145 = vld [vmem:[#allocation6 + $0x190] sm:$0xff]
    %v146 = vld [vmem:[#allocation6 + $0x198] sm:$0xff]
    %v147 = vld [vmem:[#allocation6 + $0x1a0] sm:$0xff]
    %v148 = vld [vmem:[#allocation6 + $0x1a8] sm:$0xff]
    %v149 = vld [vmem:[#allocation6 + $0x1b0] sm:$0xff]
    %v150 = vld [vmem:[#allocation6 + $0x1b8] sm:$0xff]
    %v151 = vld [vmem:[#allocation6 + $0x1c0] sm:$0xff]
    %v152 = vld [vmem:[#allocation6 + $0x1c8] sm:$0xff]
    %v153 = vld [vmem:[#allocation6 + $0x1d0] sm:$0xff]
    %v154 = vld [vmem:[#allocation6 + $0x1d8] sm:$0xff]
    %v155 = vld [vmem:[#allocation6 + $0x1e0] sm:$0xff]
    %v156 = vld [vmem:[#allocation6 + $0x1e8] sm:$0xff]
    %v157 = vld [vmem:[#allocation6 + $0x1f0] sm:$0xff]
    %v158 = vld [vmem:[#allocation6 + $0x1f8] sm:$0xff]
    %v159 = vld [vmem:[%s2] sm:$0xf]
    %v161 = vlaneseq
    %v162 = vshrl.u32 %v161, 7
    %v163 = vsub.s32 0, %v162
    %v164 = vrot.slane %v159, %v163
    %v165 = vlaneseq
    %v166 = vshrl.u32 %v165, 7
    %v167 = vsub.s32 1, %v166
    %v168 = vrot.slane %v159, %v167
    %v169 = vlaneseq
    %v170 = vshrl.u32 %v169, 7
    %v171 = vsub.s32 2, %v170
    %v172 = vrot.slane %v159, %v171
    %v173 = vlaneseq
    %v174 = vshrl.u32 %v173, 7
    %v175 = vsub.s32 3, %v174
    %v176 = vrot.slane %v159, %v175
    %v245 = vunpack.c.l.b16 %v95
    %v246 = vunpack.c.h.b16 %v95
    %v247 = vunpack.c.l.b16 %v96
    %v248 = vunpack.c.h.b16 %v96
    %v249 = vunpack.c.l.b16 %v97
    %v250 = vunpack.c.h.b16 %v97
    %v251 = vunpack.c.l.b16 %v98
    %v252 = vunpack.c.h.b16 %v98
    %v253 = vunpack.c.l.b16 %v99
    %v254 = vunpack.c.h.b16 %v99
    %v255 = vunpack.c.l.b16 %v100
    %v256 = vunpack.c.h.b16 %v100
    %v257 = vunpack.c.l.b16 %v101
    %v258 = vunpack.c.h.b16 %v101
    %v259 = vunpack.c.l.b16 %v102
    %v260 = vunpack.c.h.b16 %v102
    %v261 = vunpack.c.l.b16 %v103
    %v262 = vunpack.c.h.b16 %v103
    %v263 = vunpack.c.l.b16 %v104
    %v264 = vunpack.c.h.b16 %v104
    %v265 = vunpack.c.l.b16 %v105
    %v266 = vunpack.c.h.b16 %v105
    %v267 = vunpack.c.l.b16 %v106
    %v268 = vunpack.c.h.b16 %v106
    %v269 = vunpack.c.l.b16 %v107
    %v270 = vunpack.c.h.b16 %v107
    %v271 = vunpack.c.l.b16 %v108
    %v272 = vunpack.c.h.b16 %v108
    %v273 = vunpack.c.l.b16 %v109
    %v274 = vunpack.c.h.b16 %v109
    %v275 = vunpack.c.l.b16 %v110
    %v276 = vunpack.c.h.b16 %v110
    %v277 = vunpack.c.l.b16 %v111
    %v278 = vunpack.c.h.b16 %v111
    %v279 = vunpack.c.l.b16 %v112
    %v280 = vunpack.c.h.b16 %v112
    %v281 = vunpack.c.l.b16 %v113
    %v282 = vunpack.c.h.b16 %v113
    %v283 = vunpack.c.l.b16 %v114
    %v284 = vunpack.c.h.b16 %v114
    %v285 = vunpack.c.l.b16 %v115
    %v286 = vunpack.c.h.b16 %v115
    %v287 = vunpack.c.l.b16 %v116
    %v288 = vunpack.c.h.b16 %v116
    %v289 = vunpack.c.l.b16 %v117
    %v290 = vunpack.c.h.b16 %v117
    %v291 = vunpack.c.l.b16 %v118
    %v292 = vunpack.c.h.b16 %v118
    %v293 = vunpack.c.l.b16 %v119
    %v294 = vunpack.c.h.b16 %v119
    %v295 = vunpack.c.l.b16 %v120
    %v296 = vunpack.c.h.b16 %v120
    %v297 = vunpack.c.l.b16 %v121
    %v298 = vunpack.c.h.b16 %v121
    %v299 = vunpack.c.l.b16 %v122
    %v300 = vunpack.c.h.b16 %v122
    %v301 = vunpack.c.l.b16 %v123
    %v302 = vunpack.c.h.b16 %v123
    %v303 = vunpack.c.l.b16 %v124
    %v304 = vunpack.c.h.b16 %v124
    %v305 = vunpack.c.l.b16 %v125
    %v306 = vunpack.c.h.b16 %v125
    %v307 = vunpack.c.l.b16 %v126
    %v308 = vunpack.c.h.b16 %v126
    %v309 = vunpack.c.l.b16 %v127
    %v310 = vunpack.c.h.b16 %v127
    %v311 = vunpack.c.l.b16 %v128
    %v312 = vunpack.c.h.b16 %v128
    %v313 = vunpack.c.l.b16 %v129
    %v314 = vunpack.c.h.b16 %v129
    %v315 = vunpack.c.l.b16 %v130
    %v316 = vunpack.c.h.b16 %v130
    %v317 = vunpack.c.l.b16 %v131
    %v318 = vunpack.c.h.b16 %v131
    %v319 = vunpack.c.l.b16 %v132
    %v320 = vunpack.c.h.b16 %v132
    %v321 = vunpack.c.l.b16 %v133
    %v322 = vunpack.c.h.b16 %v133
    %v323 = vunpack.c.l.b16 %v134
    %v324 = vunpack.c.h.b16 %v134
    %v325 = vunpack.c.l.b16 %v135
    %v326 = vunpack.c.h.b16 %v135
    %v327 = vunpack.c.l.b16 %v136
    %v328 = vunpack.c.h.b16 %v136
    %v329 = vunpack.c.l.b16 %v137
    %v330 = vunpack.c.h.b16 %v137
    %v331 = vunpack.c.l.b16 %v138
    %v332 = vunpack.c.h.b16 %v138
    %v333 = vunpack.c.l.b16 %v139
    %v334 = vunpack.c.h.b16 %v139
    %v335 = vunpack.c.l.b16 %v140
    %v336 = vunpack.c.h.b16 %v140
    %v337 = vunpack.c.l.b16 %v141
    %v338 = vunpack.c.h.b16 %v141
    %v339 = vunpack.c.l.b16 %v142
    %v340 = vunpack.c.h.b16 %v142
    %v341 = vunpack.c.l.b16 %v143
    %v342 = vunpack.c.h.b16 %v143
    %v343 = vunpack.c.l.b16 %v144
    %v344 = vunpack.c.h.b16 %v144
    %v345 = vunpack.c.l.b16 %v145
    %v346 = vunpack.c.h.b16 %v145
    %v347 = vunpack.c.l.b16 %v146
    %v348 = vunpack.c.h.b16 %v146
    %v349 = vunpack.c.l.b16 %v147
    %v350 = vunpack.c.h.b16 %v147
    %v351 = vunpack.c.l.b16 %v148
    %v352 = vunpack.c.h.b16 %v148
    %v353 = vunpack.c.l.b16 %v149
    %v354 = vunpack.c.h.b16 %v149
    %v355 = vunpack.c.l.b16 %v150
    %v356 = vunpack.c.h.b16 %v150
    %v357 = vunpack.c.l.b16 %v151
    %v358 = vunpack.c.h.b16 %v151
    %v359 = vunpack.c.l.b16 %v152
    %v360 = vunpack.c.h.b16 %v152
    %v361 = vunpack.c.l.b16 %v153
    %v362 = vunpack.c.h.b16 %v153
    %v363 = vunpack.c.l.b16 %v154
    %v364 = vunpack.c.h.b16 %v154
    %v365 = vunpack.c.l.b16 %v155
    %v366 = vunpack.c.h.b16 %v155
    %v367 = vunpack.c.l.b16 %v156
    %v368 = vunpack.c.h.b16 %v156
    %v369 = vunpack.c.l.b16 %v157
    %v370 = vunpack.c.h.b16 %v157
    %v371 = vunpack.c.l.b16 %v158
    %v372 = vunpack.c.h.b16 %v158
    %v373 = vpack.c.b16 %v249, %v245
    %v374 = vpack.c.b16 %v250, %v246
    %v375 = vpack.c.b16 %v251, %v247
    %v376 = vpack.c.b16 %v252, %v248
    %v377 = vpack.c.b16 %v257, %v253
    %v378 = vpack.c.b16 %v258, %v254
    %v379 = vpack.c.b16 %v259, %v255
    %v380 = vpack.c.b16 %v260, %v256
    %v381 = vpack.c.b16 %v265, %v261
    %v382 = vpack.c.b16 %v266, %v262
    %v383 = vpack.c.b16 %v267, %v263
    %v384 = vpack.c.b16 %v268, %v264
    %v385 = vpack.c.b16 %v273, %v269
    %v386 = vpack.c.b16 %v274, %v270
    %v387 = vpack.c.b16 %v275, %v271
    %v388 = vpack.c.b16 %v276, %v272
    %v389 = vpack.c.b16 %v281, %v277
    %v390 = vpack.c.b16 %v282, %v278
    %v391 = vpack.c.b16 %v283, %v279
    %v392 = vpack.c.b16 %v284, %v280
    %v393 = vpack.c.b16 %v289, %v285
    %v394 = vpack.c.b16 %v290, %v286
    %v395 = vpack.c.b16 %v291, %v287
    %v396 = vpack.c.b16 %v292, %v288
    %v397 = vpack.c.b16 %v297, %v293
    %v398 = vpack.c.b16 %v298, %v294
    %v399 = vpack.c.b16 %v299, %v295
    %v400 = vpack.c.b16 %v300, %v296
    %v401 = vpack.c.b16 %v305, %v301
    %v402 = vpack.c.b16 %v306, %v302
    %v403 = vpack.c.b16 %v307, %v303
    %v404 = vpack.c.b16 %v308, %v304
    %v405 = vpack.c.b16 %v313, %v309
    %v406 = vpack.c.b16 %v314, %v310
    %v407 = vpack.c.b16 %v315, %v311
    %v408 = vpack.c.b16 %v316, %v312
    %v409 = vpack.c.b16 %v321, %v317
    %v410 = vpack.c.b16 %v322, %v318
    %v411 = vpack.c.b16 %v323, %v319
    %v412 = vpack.c.b16 %v324, %v320
    %v413 = vpack.c.b16 %v329, %v325
    %v414 = vpack.c.b16 %v330, %v326
    %v415 = vpack.c.b16 %v331, %v327
    %v416 = vpack.c.b16 %v332, %v328
    %v417 = vpack.c.b16 %v337, %v333
    %v418 = vpack.c.b16 %v338, %v334
    %v419 = vpack.c.b16 %v339, %v335
    %v420 = vpack.c.b16 %v340, %v336
    %v421 = vpack.c.b16 %v345, %v341
    %v422 = vpack.c.b16 %v346, %v342
    %v423 = vpack.c.b16 %v347, %v343
    %v424 = vpack.c.b16 %v348, %v344
    %v425 = vpack.c.b16 %v353, %v349
    %v426 = vpack.c.b16 %v354, %v350
    %v427 = vpack.c.b16 %v355, %v351
    %v428 = vpack.c.b16 %v356, %v352
    %v429 = vpack.c.b16 %v361, %v357
    %v430 = vpack.c.b16 %v362, %v358
    %v431 = vpack.c.b16 %v363, %v359
    %v432 = vpack.c.b16 %v364, %v360
    %v433 = vpack.c.b16 %v369, %v365
    %v434 = vpack.c.b16 %v370, %v366
    %v435 = vpack.c.b16 %v371, %v367
    %v436 = vpack.c.b16 %v372, %v368
    %501 = vmatprep.subr.bf16.mxu0 %v374
    %502 = vmatpush1.bf16.msra.mxu0 %v373
    %503 = vmatprep.subr.bf16.mxu0 %v378
    %504 = vmatpush1.bf16.msra.mxu0 %v377
    %505 = vmatprep.subr.bf16.mxu0 %v382
    %506 = vmatpush1.bf16.msra.mxu0 %v381
    %507 = vmatprep.subr.bf16.mxu0 %v386
    %508 = vmatpush1.bf16.msra.mxu0 %v385
    %509 = vmatprep.subr.bf16.mxu0 %v390
    %510 = vmatpush1.bf16.msra.mxu0 %v389
    %511 = vmatprep.subr.bf16.mxu0 %v394
    %512 = vmatpush1.bf16.msra.mxu0 %v393
    %513 = vmatprep.subr.bf16.mxu0 %v398
    %514 = vmatpush1.bf16.msra.mxu0 %v397
    %515 = vmatprep.subr.bf16.mxu0 %v402
    %516 = vmatpush1.bf16.msra.mxu0 %v401
    %517 = vmatprep.subr.bf16.mxu0 %v406
    %518 = vmatpush1.bf16.msra.mxu0 %v405
    %519 = vmatprep.subr.bf16.mxu0 %v410
    %520 = vmatpush1.bf16.msra.mxu0 %v409
    %521 = vmatprep.subr.bf16.mxu0 %v414
    %522 = vmatpush1.bf16.msra.mxu0 %v413
    %523 = vmatprep.subr.bf16.mxu0 %v418
    %524 = vmatpush1.bf16.msra.mxu0 %v417
    %525 = vmatprep.subr.bf16.mxu0 %v422
    %526 = vmatpush1.bf16.msra.mxu0 %v421
    %527 = vmatprep.subr.bf16.mxu0 %v426
    %528 = vmatpush1.bf16.msra.mxu0 %v425
    %529 = vmatprep.subr.bf16.mxu0 %v430
    %530 = vmatpush1.bf16.msra.mxu0 %v429
    %531 = vmatprep.subr.bf16.mxu0 %v434
    %532 = vmatpush1.bf16.msra.mxu0 %v433
    %533 = vmatprep.mubr.bf16.mxu0 %v88
    %534 = vmatmul.mubr.bf16.gmra.mrb[0].mxu0 %v87
    %v535 = vpop.f32.mrb[0].mxu0
    %v536 = vadd.f32 %v164, %v535
    %v537 = vpop.f32.mrb[0].mxu0
    %v538 = vadd.f32 %v168, %v537
    %v539 = vpop.f32.mrb[0].mxu0
    %v540 = vadd.f32 %v164, %v539
    %v541 = vpop.f32.mrb[0].mxu0
    %v542 = vadd.f32 %v168, %v541
    %543 = vmatprep.mubr.bf16.mxu0 %v90
    %544 = vmatmul.mubr.bf16.gmra.mrb[0].mxu0 %v89
    %v545 = vpop.f32.mrb[0].mxu0
    %v546 = vadd.f32 %v164, %v545
    %v547 = vpop.f32.mrb[0].mxu0
    %v548 = vadd.f32 %v168, %v547
    %v549 = vpop.f32.mrb[0].mxu0
    %v550 = vadd.f32 %v164, %v549
    %v551 = vpop.f32.mrb[0].mxu0
    %v552 = vadd.f32 %v168, %v551
    %553 = vmatprep.mubr.bf16.mxu0 %v92
    %554 = vmatmul.mubr.bf16.gmra.mrb[0].mxu0 %v91
    %v555 = vpop.f32.mrb[0].mxu0
    %v556 = vadd.f32 %v164, %v555
    %v557 = vpop.f32.mrb[0].mxu0
    %v558 = vadd.f32 %v168, %v557
    %v559 = vpop.f32.mrb[0].mxu0
    %v560 = vadd.f32 %v164, %v559
    %v561 = vpop.f32.mrb[0].mxu0
    %v562 = vadd.f32 %v168, %v561
    %563 = vmatprep.mubr.bf16.mxu0 %v94
    %564 = vmatmul.mubr.bf16.gmra.mrb[0].mxu0 %v93
    %v565 = vpop.f32.mrb[0].mxu0
    %v566 = vadd.f32 %v164, %v565
    %v567 = vpop.f32.mrb[0].mxu0
    %v568 = vadd.f32 %v168, %v567
    %v569 = vpop.f32.mrb[0].mxu0
    %v570 = vadd.f32 %v164, %v569
    %v571 = vpop.f32.mrb[0].mxu0
    %v572 = vadd.f32 %v168, %v571
    %573 = vdwg.mxu0
    %574 = vmatprep.subr.bf16.mxu0 %v376
    %575 = vmatpush1.bf16.msra.mxu0 %v375
    %576 = vmatprep.subr.bf16.mxu0 %v380
    %577 = vmatpush1.bf16.msra.mxu0 %v379
    %578 = vmatprep.subr.bf16.mxu0 %v384
    %579 = vmatpush1.bf16.msra.mxu0 %v383
    %580 = vmatprep.subr.bf16.mxu0 %v388
    %581 = vmatpush1.bf16.msra.mxu0 %v387
    %582 = vmatprep.subr.bf16.mxu0 %v392
    %583 = vmatpush1.bf16.msra.mxu0 %v391
    %584 = vmatprep.subr.bf16.mxu0 %v396
    %585 = vmatpush1.bf16.msra.mxu0 %v395
    %586 = vmatprep.subr.bf16.mxu0 %v400
    %587 = vmatpush1.bf16.msra.mxu0 %v399
    %588 = vmatprep.subr.bf16.mxu0 %v404
    %589 = vmatpush1.bf16.msra.mxu0 %v403
    %590 = vmatprep.subr.bf16.mxu0 %v408
    %591 = vmatpush1.bf16.msra.mxu0 %v407
    %592 = vmatprep.subr.bf16.mxu0 %v412
    %593 = vmatpush1.bf16.msra.mxu0 %v411
    %594 = vmatprep.subr.bf16.mxu0 %v416
    %595 = vmatpush1.bf16.msra.mxu0 %v415
    %596 = vmatprep.subr.bf16.mxu0 %v420
    %597 = vmatpush1.bf16.msra.mxu0 %v419
    %598 = vmatprep.subr.bf16.mxu0 %v424
    %599 = vmatpush1.bf16.msra.mxu0 %v423
    %600 = vmatprep.subr.bf16.mxu0 %v428
    %601 = vmatpush1.bf16.msra.mxu0 %v427
    %602 = vmatprep.subr.bf16.mxu0 %v432
    %603 = vmatpush1.bf16.msra.mxu0 %v431
    %604 = vmatprep.subr.bf16.mxu0 %v436
    %605 = vmatpush1.bf16.msra.mxu0 %v435
    %606 = vmatprep.mubr.bf16.mxu0 %v88
    %607 = vmatmul.mubr.bf16.gmra.mrb[0].mxu0 %v87
    %v608 = vpop.f32.mrb[0].mxu0
    %v609 = vadd.f32 %v172, %v608
    %v610 = vpop.f32.mrb[0].mxu0
    %v611 = vadd.f32 %v176, %v610
    %v612 = vpop.f32.mrb[0].mxu0
    %v613 = vadd.f32 %v172, %v612
    %v614 = vpop.f32.mrb[0].mxu0
    %v615 = vadd.f32 %v176, %v614
    %616 = vmatprep.mubr.bf16.mxu0 %v90
    %617 = vmatmul.mubr.bf16.gmra.mrb[0].mxu0 %v89
    %v618 = vpop.f32.mrb[0].mxu0
    %v619 = vadd.f32 %v172, %v618
    %v620 = vpop.f32.mrb[0].mxu0
    %v621 = vadd.f32 %v176, %v620
    %v622 = vpop.f32.mrb[0].mxu0
    %v623 = vadd.f32 %v172, %v622
    %v624 = vpop.f32.mrb[0].mxu0
    %v625 = vadd.f32 %v176, %v624
    %626 = vmatprep.mubr.bf16.mxu0 %v92
    %627 = vmatmul.mubr.bf16.gmra.mrb[0].mxu0 %v91
    %v628 = vpop.f32.mrb[0].mxu0
    %v629 = vadd.f32 %v172, %v628
    %v630 = vpop.f32.mrb[0].mxu0
    %v631 = vadd.f32 %v176, %v630
    %v632 = vpop.f32.mrb[0].mxu0
    %v633 = vadd.f32 %v172, %v632
    %v634 = vpop.f32.mrb[0].mxu0
    %v635 = vadd.f32 %v176, %v634
    %636 = vmatprep.mubr.bf16.mxu0 %v94
    %637 = vmatmul.mubr.bf16.gmra.mrb[0].mxu0 %v93
    %v638 = vpop.f32.mrb[0].mxu0
    %v639 = vadd.f32 %v172, %v638
    %v640 = vpop.f32.mrb[0].mxu0
    %v641 = vadd.f32 %v176, %v640
    %v642 = vpop.f32.mrb[0].mxu0
    %v643 = vadd.f32 %v172, %v642
    %v644 = vpop.f32.mrb[0].mxu0
    %v645 = vadd.f32 %v176, %v644
    %646 = vdwg.mxu0
    %v647 = vmax.f32 %v536, 0.0
    %v648 = vmax.f32 %v538, 0.0
    %v649 = vmax.f32 %v609, 0.0
    %v650 = vmax.f32 %v611, 0.0
    %v651 = vmax.f32 %v540, 0.0
    %v652 = vmax.f32 %v542, 0.0
    %v653 = vmax.f32 %v613, 0.0
    %v654 = vmax.f32 %v615, 0.0
    %v655 = vmax.f32 %v546, 0.0
    %v656 = vmax.f32 %v548, 0.0
    %v657 = vmax.f32 %v619, 0.0
    %v658 = vmax.f32 %v621, 0.0
    %v659 = vmax.f32 %v550, 0.0
    %v660 = vmax.f32 %v552, 0.0
    %v661 = vmax.f32 %v623, 0.0
    %v662 = vmax.f32 %v625, 0.0
    %v663 = vmax.f32 %v556, 0.0
    %v664 = vmax.f32 %v558, 0.0
    %v665 = vmax.f32 %v629, 0.0
    %v666 = vmax.f32 %v631, 0.0
    %v667 = vmax.f32 %v560, 0.0
    %v668 = vmax.f32 %v562, 0.0
    %v669 = vmax.f32 %v633, 0.0
    %v670 = vmax.f32 %v635, 0.0
    %v671 = vmax.f32 %v566, 0.0
    %v672 = vmax.f32 %v568, 0.0
    %v673 = vmax.f32 %v639, 0.0
    %v674 = vmax.f32 %v641, 0.0
    %v675 = vmax.f32 %v570, 0.0
    %v676 = vmax.f32 %v572, 0.0
    %v677 = vmax.f32 %v643, 0.0
    %v678 = vmax.f32 %v645, 0.0
    %v679 = vpack.c.bf16 %v651, %v647
    %v680 = vpack.c.bf16 %v652, %v648
    %v681 = vpack.c.bf16 %v653, %v649
    %v682 = vpack.c.bf16 %v654, %v650
    %v683 = vpack.c.bf16 %v659, %v655
    %v684 = vpack.c.bf16 %v660, %v656
    %v685 = vpack.c.bf16 %v661, %v657
    %v686 = vpack.c.bf16 %v662, %v658
    %v687 = vpack.c.bf16 %v667, %v663
    %v688 = vpack.c.bf16 %v668, %v664
    %v689 = vpack.c.bf16 %v669, %v665
    %v690 = vpack.c.bf16 %v670, %v666
    %v691 = vpack.c.bf16 %v675, %v671
    %v692 = vpack.c.bf16 %v676, %v672
    %v693 = vpack.c.bf16 %v677, %v673
    %v694 = vpack.c.bf16 %v678, %v674
    %v695 = vld [vmem:[#allocation8] sm:$0xf]
    %v696 = vld [vmem:[#allocation8 + $0x4] sm:$0xf]
    %v697 = vld [vmem:[#allocation8 + $0x8] sm:$0xf]
    %v698 = vld [vmem:[#allocation8 + $0xc] sm:$0xf]
    %v699 = vld [vmem:[#allocation8 + $0x10] sm:$0xf]
    %v700 = vld [vmem:[#allocation8 + $0x14] sm:$0xf]
    %v701 = vld [vmem:[#allocation8 + $0x18] sm:$0xf]
    %v702 = vld [vmem:[#allocation8 + $0x1c] sm:$0xf]
    %v703 = vld [vmem:[#allocation8 + $0x20] sm:$0xf]
    %v704 = vld [vmem:[#allocation8 + $0x24] sm:$0xf]
    %v705 = vld [vmem:[#allocation8 + $0x28] sm:$0xf]
    %v706 = vld [vmem:[#allocation8 + $0x2c] sm:$0xf]
    %v707 = vld [vmem:[#allocation8 + $0x30] sm:$0xf]
    %v708 = vld [vmem:[#allocation8 + $0x34] sm:$0xf]
    %v709 = vld [vmem:[#allocation8 + $0x38] sm:$0xf]
    %v710 = vld [vmem:[#allocation8 + $0x3c] sm:$0xf]
    %v711 = vld [vmem:[#allocation8 + $0x40] sm:$0xf]
    %v712 = vld [vmem:[#allocation8 + $0x44] sm:$0xf]
    %v713 = vld [vmem:[#allocation8 + $0x48] sm:$0xf]
    %v714 = vld [vmem:[#allocation8 + $0x4c] sm:$0xf]
    %v715 = vld [vmem:[#allocation8 + $0x50] sm:$0xf]
    %v716 = vld [vmem:[#allocation8 + $0x54] sm:$0xf]
    %v717 = vld [vmem:[#allocation8 + $0x58] sm:$0xf]
    %v718 = vld [vmem:[#allocation8 + $0x5c] sm:$0xf]
    %v719 = vld [vmem:[#allocation8 + $0x60] sm:$0xf]
    %v720 = vld [vmem:[#allocation8 + $0x64] sm:$0xf]
    %v721 = vld [vmem:[#allocation8 + $0x68] sm:$0xf]
    %v722 = vld [vmem:[#allocation8 + $0x6c] sm:$0xf]
    %v723 = vld [vmem:[#allocation8 + $0x70] sm:$0xf]
    %v724 = vld [vmem:[#allocation8 + $0x74] sm:$0xf]
    %v725 = vld [vmem:[#allocation8 + $0x78] sm:$0xf]
    %v726 = vld [vmem:[#allocation8 + $0x7c] sm:$0xf]
    %v727 = vld [vmem:[#allocation8 + $0x80] sm:$0xf]
    %v728 = vld [vmem:[#allocation8 + $0x84] sm:$0xf]
    %v729 = vld [vmem:[#allocation8 + $0x88] sm:$0xf]
    %v730 = vld [vmem:[#allocation8 + $0x8c] sm:$0xf]
    %v731 = vld [vmem:[#allocation8 + $0x90] sm:$0xf]
    %v732 = vld [vmem:[#allocation8 + $0x94] sm:$0xf]
    %v733 = vld [vmem:[#allocation8 + $0x98] sm:$0xf]
    %v734 = vld [vmem:[#allocation8 + $0x9c] sm:$0xf]
    %v735 = vld [vmem:[#allocation8 + $0xa0] sm:$0xf]
    %v736 = vld [vmem:[#allocation8 + $0xa4] sm:$0xf]
    %v737 = vld [vmem:[#allocation8 + $0xa8] sm:$0xf]
    %v738 = vld [vmem:[#allocation8 + $0xac] sm:$0xf]
    %v739 = vld [vmem:[#allocation8 + $0xb0] sm:$0xf]
    %v740 = vld [vmem:[#allocation8 + $0xb4] sm:$0xf]
    %v741 = vld [vmem:[#allocation8 + $0xb8] sm:$0xf]
    %v742 = vld [vmem:[#allocation8 + $0xbc] sm:$0xf]
    %v743 = vld [vmem:[#allocation8 + $0xc0] sm:$0xf]
    %v744 = vld [vmem:[#allocation8 + $0xc4] sm:$0xf]
    %v745 = vld [vmem:[#allocation8 + $0xc8] sm:$0xf]
    %v746 = vld [vmem:[#allocation8 + $0xcc] sm:$0xf]
    %v747 = vld [vmem:[#allocation8 + $0xd0] sm:$0xf]
    %v748 = vld [vmem:[#allocation8 + $0xd4] sm:$0xf]
    %v749 = vld [vmem:[#allocation8 + $0xd8] sm:$0xf]
    %v750 = vld [vmem:[#allocation8 + $0xdc] sm:$0xf]
    %v751 = vld [vmem:[#allocation8 + $0xe0] sm:$0xf]
    %v752 = vld [vmem:[#allocation8 + $0xe4] sm:$0xf]
    %v753 = vld [vmem:[#allocation8 + $0xe8] sm:$0xf]
    %v754 = vld [vmem:[#allocation8 + $0xec] sm:$0xf]
    %v755 = vld [vmem:[#allocation8 + $0xf0] sm:$0xf]
    %v756 = vld [vmem:[#allocation8 + $0xf4] sm:$0xf]
    %v757 = vld [vmem:[#allocation8 + $0xf8] sm:$0xf]
    %v758 = vld [vmem:[#allocation8 + $0xfc] sm:$0xf]
    %v759 = vld [vmem:[%s4] sm:$0x1]
    %v761 = vlaneseq
    %v762 = vshrl.u32 %v761, 7
    %v763 = vsub.s32 0, %v762
    %v764 = vrot.slane %v759, %v763
    %v830 = vunpack.c.l.b16 %v695
    %v831 = vunpack.c.l.b16 %v696
    %v832 = vunpack.c.l.b16 %v697
    %v833 = vunpack.c.l.b16 %v698
    %v834 = vunpack.c.l.b16 %v699
    %v835 = vunpack.c.l.b16 %v700
    %v836 = vunpack.c.l.b16 %v701
    %v837 = vunpack.c.l.b16 %v702
    %v838 = vunpack.c.l.b16 %v703
    %v839 = vunpack.c.l.b16 %v704
    %v840 = vunpack.c.l.b16 %v705
    %v841 = vunpack.c.l.b16 %v706
    %v842 = vunpack.c.l.b16 %v707
    %v843 = vunpack.c.l.b16 %v708
    %v844 = vunpack.c.l.b16 %v709
    %v845 = vunpack.c.l.b16 %v710
    %v846 = vunpack.c.l.b16 %v711
    %v847 = vunpack.c.l.b16 %v712
    %v848 = vunpack.c.l.b16 %v713
    %v849 = vunpack.c.l.b16 %v714
    %v850 = vunpack.c.l.b16 %v715
    %v851 = vunpack.c.l.b16 %v716
    %v852 = vunpack.c.l.b16 %v717
    %v853 = vunpack.c.l.b16 %v718
    %v854 = vunpack.c.l.b16 %v719
    %v855 = vunpack.c.l.b16 %v720
    %v856 = vunpack.c.l.b16 %v721
    %v857 = vunpack.c.l.b16 %v722
    %v858 = vunpack.c.l.b16 %v723
    %v859 = vunpack.c.l.b16 %v724
    %v860 = vunpack.c.l.b16 %v725
    %v861 = vunpack.c.l.b16 %v726
    %v862 = vunpack.c.l.b16 %v727
    %v863 = vunpack.c.l.b16 %v728
    %v864 = vunpack.c.l.b16 %v729
    %v865 = vunpack.c.l.b16 %v730
    %v866 = vunpack.c.l.b16 %v731
    %v867 = vunpack.c.l.b16 %v732
    %v868 = vunpack.c.l.b16 %v733
    %v869 = vunpack.c.l.b16 %v734
    %v870 = vunpack.c.l.b16 %v735
    %v871 = vunpack.c.l.b16 %v736
    %v872 = vunpack.c.l.b16 %v737
    %v873 = vunpack.c.l.b16 %v738
    %v874 = vunpack.c.l.b16 %v739
    %v875 = vunpack.c.l.b16 %v740
    %v876 = vunpack.c.l.b16 %v741
    %v877 = vunpack.c.l.b16 %v742
    %v878 = vunpack.c.l.b16 %v743
    %v879 = vunpack.c.l.b16 %v744
    %v880 = vunpack.c.l.b16 %v745
    %v881 = vunpack.c.l.b16 %v746
    %v882 = vunpack.c.l.b16 %v747
    %v883 = vunpack.c.l.b16 %v748
    %v884 = vunpack.c.l.b16 %v749
    %v885 = vunpack.c.l.b16 %v750
    %v886 = vunpack.c.l.b16 %v751
    %v887 = vunpack.c.l.b16 %v752
    %v888 = vunpack.c.l.b16 %v753
    %v889 = vunpack.c.l.b16 %v754
    %v890 = vunpack.c.l.b16 %v755
    %v891 = vunpack.c.l.b16 %v756
    %v892 = vunpack.c.l.b16 %v757
    %v893 = vunpack.c.l.b16 %v758
    %v894 = vpack.c.b16 %v831, %v830
    %v895 = vpack.c.b16 %v833, %v832
    %v896 = vpack.c.b16 %v835, %v834
    %v897 = vpack.c.b16 %v837, %v836
    %v898 = vpack.c.b16 %v839, %v838
    %v899 = vpack.c.b16 %v841, %v840
    %v900 = vpack.c.b16 %v843, %v842
    %v901 = vpack.c.b16 %v845, %v844
    %v902 = vpack.c.b16 %v847, %v846
    %v903 = vpack.c.b16 %v849, %v848
    %v904 = vpack.c.b16 %v851, %v850
    %v905 = vpack.c.b16 %v853, %v852
    %v906 = vpack.c.b16 %v855, %v854
    %v907 = vpack.c.b16 %v857, %v856
    %v908 = vpack.c.b16 %v859, %v858
    %v909 = vpack.c.b16 %v861, %v860
    %v910 = vpack.c.b16 %v863, %v862
    %v911 = vpack.c.b16 %v865, %v864
    %v912 = vpack.c.b16 %v867, %v866
    %v913 = vpack.c.b16 %v869, %v868
    %v914 = vpack.c.b16 %v871, %v870
    %v915 = vpack.c.b16 %v873, %v872
    %v916 = vpack.c.b16 %v875, %v874
    %v917 = vpack.c.b16 %v877, %v876
    %v918 = vpack.c.b16 %v879, %v878
    %v919 = vpack.c.b16 %v881, %v880
    %v920 = vpack.c.b16 %v883, %v882
    %v921 = vpack.c.b16 %v885, %v884
    %v922 = vpack.c.b16 %v887, %v886
    %v923 = vpack.c.b16 %v889, %v888
    %v924 = vpack.c.b16 %v891, %v890
    %v925 = vpack.c.b16 %v893, %v892
    %958 = vmatprep.subr.bf16.mxu0 0
    %959 = vmatpush1.bf16.msra.mxu0 %v894
    %960 = vmatprep.subr.bf16.mxu0 0
    %961 = vmatpush1.bf16.msra.mxu0 %v895
    %962 = vmatprep.subr.bf16.mxu0 0
    %963 = vmatpush1.bf16.msra.mxu0 %v896
    %964 = vmatprep.subr.bf16.mxu0 0
    %965 = vmatpush1.bf16.msra.mxu0 %v897
    %966 = vmatprep.subr.bf16.mxu0 0
    %967 = vmatpush1.bf16.msra.mxu0 %v898
    %968 = vmatprep.subr.bf16.mxu0 0
    %969 = vmatpush1.bf16.msra.mxu0 %v899
    %970 = vmatprep.subr.bf16.mxu0 0
    %971 = vmatpush1.bf16.msra.mxu0 %v900
    %972 = vmatprep.subr.bf16.mxu0 0
    %973 = vmatpush1.bf16.msra.mxu0 %v901
    %974 = vmatprep.subr.bf16.mxu0 0
    %975 = vmatpush1.bf16.msra.mxu0 %v902
    %976 = vmatprep.subr.bf16.mxu0 0
    %977 = vmatpush1.bf16.msra.mxu0 %v903
    %978 = vmatprep.subr.bf16.mxu0 0
    %979 = vmatpush1.bf16.msra.mxu0 %v904
    %980 = vmatprep.subr.bf16.mxu0 0
    %981 = vmatpush1.bf16.msra.mxu0 %v905
    %982 = vmatprep.subr.bf16.mxu0 0
    %983 = vmatpush1.bf16.msra.mxu0 %v906
    %984 = vmatprep.subr.bf16.mxu0 0
    %985 = vmatpush1.bf16.msra.mxu0 %v907
    %986 = vmatprep.subr.bf16.mxu0 0
    %987 = vmatpush1.bf16.msra.mxu0 %v908
    %988 = vmatprep.subr.bf16.mxu0 0
    %989 = vmatpush1.bf16.msra.mxu0 %v909
    %990 = vmatprep.mubr.bf16.mxu0 %v680
    %991 = vmatmul.mubr.bf16.gmra.mrb[0].mxu0 %v679
    %v992 = vpop.f32.mrb[0].mxu0
    %v993 = vadd.f32 %v764, %v992
    %v994 = vpop.f32.mrb[0].mxu0
    %v995 = vpop.f32.mrb[0].mxu0
    %v996 = vadd.f32 %v764, %v995
    %v997 = vpop.f32.mrb[0].mxu0
    %998 = vmatprep.mubr.bf16.mxu0 %v684
    %999 = vmatmul.mubr.bf16.gmra.mrb[0].mxu0 %v683
    %v1000 = vpop.f32.mrb[0].mxu0
    %v1001 = vadd.f32 %v764, %v1000
    %v1002 = vpop.f32.mrb[0].mxu0
    %v1003 = vpop.f32.mrb[0].mxu0
    %v1004 = vadd.f32 %v764, %v1003
    %v1005 = vpop.f32.mrb[0].mxu0
    %1006 = vmatprep.mubr.bf16.mxu0 %v688
    %1007 = vmatmul.mubr.bf16.gmra.mrb[0].mxu0 %v687
    %v1008 = vpop.f32.mrb[0].mxu0
    %v1009 = vadd.f32 %v764, %v1008
    %v1010 = vpop.f32.mrb[0].mxu0
    %v1011 = vpop.f32.mrb[0].mxu0
    %v1012 = vadd.f32 %v764, %v1011
    %v1013 = vpop.f32.mrb[0].mxu0
    %1014 = vmatprep.mubr.bf16.mxu0 %v692
    %1015 = vmatmul.mubr.bf16.gmra.mrb[0].mxu0 %v691
    %v1016 = vpop.f32.mrb[0].mxu0
    %v1017 = vadd.f32 %v764, %v1016
    %v1018 = vpop.f32.mrb[0].mxu0
    %v1019 = vpop.f32.mrb[0].mxu0
    %v1020 = vadd.f32 %v764, %v1019
    %v1021 = vpop.f32.mrb[0].mxu0
    %1022 = vdwg.mxu0
    %1023 = vmatprep.subr.bf16.mxu0 0
    %1024 = vmatpush1.bf16.msra.mxu0 %v910
    %1025 = vmatprep.subr.bf16.mxu0 0
    %1026 = vmatpush1.bf16.msra.mxu0 %v911
    %1027 = vmatprep.subr.bf16.mxu0 0
    %1028 = vmatpush1.bf16.msra.mxu0 %v912
    %1029 = vmatprep.subr.bf16.mxu0 0
    %1030 = vmatpush1.bf16.msra.mxu0 %v913
    %1031 = vmatprep.subr.bf16.mxu0 0
    %1032 = vmatpush1.bf16.msra.mxu0 %v914
    %1033 = vmatprep.subr.bf16.mxu0 0
    %1034 = vmatpush1.bf16.msra.mxu0 %v915
    %1035 = vmatprep.subr.bf16.mxu0 0
    %1036 = vmatpush1.bf16.msra.mxu0 %v916
    %1037 = vmatprep.subr.bf16.mxu0 0
    %1038 = vmatpush1.bf16.msra.mxu0 %v917
    %1039 = vmatprep.subr.bf16.mxu0 0
    %1040 = vmatpush1.bf16.msra.mxu0 %v918
    %1041 = vmatprep.subr.bf16.mxu0 0
    %1042 = vmatpush1.bf16.msra.mxu0 %v919
    %1043 = vmatprep.subr.bf16.mxu0 0
    %1044 = vmatpush1.bf16.msra.mxu0 %v920
    %1045 = vmatprep.subr.bf16.mxu0 0
    %1046 = vmatpush1.bf16.msra.mxu0 %v921
    %1047 = vmatprep.subr.bf16.mxu0 0
    %1048 = vmatpush1.bf16.msra.mxu0 %v922
    %1049 = vmatprep.subr.bf16.mxu0 0
    %1050 = vmatpush1.bf16.msra.mxu0 %v923
    %1051 = vmatprep.subr.bf16.mxu0 0
    %1052 = vmatpush1.bf16.msra.mxu0 %v924
    %1053 = vmatprep.subr.bf16.mxu0 0
    %1054 = vmatpush1.bf16.msra.mxu0 %v925
    %1055 = vmatprep.mubr.bf16.mxu0 %v682
    %1056 = vmatmul.mubr.bf16.gmra.mrb[0].mxu0 %v681
    %v1057 = vpop.f32.mrb[0].mxu0
    %v1058 = vadd.f32 %v993, %v1057
    %v1059 = vpop.f32.mrb[0].mxu0
    %v1060 = vpop.f32.mrb[0].mxu0
    %v1061 = vadd.f32 %v996, %v1060
    %v1062 = vpop.f32.mrb[0].mxu0
    %1063 = vmatprep.mubr.bf16.mxu0 %v686
    %1064 = vmatmul.mubr.bf16.gmra.mrb[0].mxu0 %v685
    %v1065 = vpop.f32.mrb[0].mxu0
    %v1066 = vadd.f32 %v1001, %v1065
    %v1067 = vpop.f32.mrb[0].mxu0
    %v1068 = vpop.f32.mrb[0].mxu0
    %v1069 = vadd.f32 %v1004, %v1068
    %v1070 = vpop.f32.mrb[0].mxu0
    %1071 = vmatprep.mubr.bf16.mxu0 %v690
    %1072 = vmatmul.mubr.bf16.gmra.mrb[0].mxu0 %v689
    %v1073 = vpop.f32.mrb[0].mxu0
    %v1074 = vadd.f32 %v1009, %v1073
    %v1075 = vpop.f32.mrb[0].mxu0
    %v1076 = vpop.f32.mrb[0].mxu0
    %v1077 = vadd.f32 %v1012, %v1076
    %v1078 = vpop.f32.mrb[0].mxu0
    %1079 = vmatprep.mubr.bf16.mxu0 %v694
    %1080 = vmatmul.mubr.bf16.gmra.mrb[0].mxu0 %v693
    %v1081 = vpop.f32.mrb[0].mxu0
    %v1082 = vadd.f32 %v1017, %v1081
    %v1083 = vpop.f32.mrb[0].mxu0
    %v1084 = vpop.f32.mrb[0].mxu0
    %v1085 = vadd.f32 %v1020, %v1084
    %v1086 = vpop.f32.mrb[0].mxu0
    %1087 = vdwg.mxu0
    %v1088 = vmax.f32 %v1058, 0.0
    %v1089 = vmax.f32 %v1061, 0.0
    %v1090 = vmax.f32 %v1066, 0.0
    %v1091 = vmax.f32 %v1069, 0.0
    %v1092 = vmax.f32 %v1074, 0.0
    %v1093 = vmax.f32 %v1077, 0.0
    %v1094 = vmax.f32 %v1082, 0.0
    %v1095 = vmax.f32 %v1085, 0.0
    %v1096 = vld [vmem:[%s5] sm:$0x1]
    %v1097 = vld [vmem:[#allocation2] sm:$0x1]
    %1099 = vset.pattern.permute.xlu0 0
    %1100 = vperm.xlu0 %1099, %v1097
    %v1101 = vpop.permute.xlu0 %1100
    %v1103 = vlaneseq
    %v1104 = vshrl.u32 %v1103, 7
    %v1105 = vsub.s32 0, %v1104
    %v1106 = vrot.slane %v1101, %v1105
    %1107 = vmatprep.subr.mxu0 0.0
    %1108 = vmatpush1.xpose.msra.mxu0 %v1088
    %1109 = vmatprep.subr.mxu0 0.0
    %1110 = vmatpush1.xpose.msra.mxu0 %v1089
    %1111 = vmatprep.subr.mxu0 0.0
    %1112 = vmatpush1.xpose.msra.mxu0 %v1090
    %1113 = vmatprep.subr.mxu0 0.0
    %1114 = vmatpush1.xpose.msra.mxu0 %v1091
    %1115 = vmatprep.subr.mxu0 0.0
    %1116 = vmatpush1.xpose.msra.mxu0 %v1092
    %1117 = vmatprep.subr.mxu0 0.0
    %1118 = vmatpush1.xpose.msra.mxu0 %v1093
    %1119 = vmatprep.subr.mxu0 0.0
    %1120 = vmatpush1.xpose.msra.mxu0 %v1094
    %1121 = vmatprep.subr.mxu0 0.0
    %1122 = vmatpush1.xpose.msra.mxu0 %v1095
    %1123 = vmatprep.subr.mxu0 0.0
    %1124 = vmatpush1.xpose.msra.mxu0 0.0
    %1125 = vmatprep.subr.mxu0 0.0
    %1126 = vmatpush1.xpose.msra.mxu0 0.0
    %1127 = vmatprep.subr.mxu0 0.0
    %1128 = vmatpush1.xpose.msra.mxu0 0.0
    %1129 = vmatprep.subr.mxu0 0.0
    %1130 = vmatpush1.xpose.msra.mxu0 0.0
    %1131 = vmatprep.subr.mxu0 0.0
    %1132 = vmatpush1.xpose.msra.mxu0 0.0
    %1133 = vmatprep.subr.mxu0 0.0
    %1134 = vmatpush1.xpose.msra.mxu0 0.0
    %1135 = vmatprep.subr.mxu0 0.0
    %1136 = vmatpush1.xpose.msra.mxu0 0.0
    %1137 = vmatprep.subr.mxu0 0.0
    %1138 = vmatpush1.xpose.msra.mxu0 0.0
    %1139 = vmatprep.subr.mxu0 0.0
    %1140 = vmatpush1.xpose.msra.mxu0 0.0
    %1141 = vmatprep.subr.mxu0 0.0
    %1142 = vmatpush1.xpose.msra.mxu0 0.0
    %1143 = vmatprep.subr.mxu0 0.0
    %1144 = vmatpush1.xpose.msra.mxu0 0.0
    %1145 = vmatprep.subr.mxu0 0.0
    %1146 = vmatpush1.xpose.msra.mxu0 0.0
    %1147 = vmatprep.subr.mxu0 0.0
    %1148 = vmatpush1.xpose.msra.mxu0 0.0
    %1149 = vmatprep.subr.mxu0 0.0
    %1150 = vmatpush1.xpose.msra.mxu0 0.0
    %1151 = vmatprep.subr.mxu0 0.0
    %1152 = vmatpush1.xpose.msra.mxu0 0.0
    %1153 = vmatprep.subr.mxu0 0.0
    %1154 = vmatpush1.xpose.msra.mxu0 0.0
    %1155 = vmatprep.subr.mxu0 0.0
    %1156 = vmatpush1.xpose.msra.mxu0 0.0
    %1157 = vmatprep.subr.mxu0 0.0
    %1158 = vmatpush1.xpose.msra.mxu0 0.0
    %1159 = vmatprep.subr.mxu0 0.0
    %1160 = vmatpush1.xpose.msra.mxu0 0.0
    %1161 = vmatprep.subr.mxu0 0.0
    %1162 = vmatpush1.xpose.msra.mxu0 0.0
    %1163 = vmatprep.subr.mxu0 0.0
    %1164 = vmatpush1.xpose.msra.mxu0 0.0
    %1165 = vmatprep.subr.mxu0 0.0
    %1166 = vmatpush1.xpose.msra.mxu0 0.0
    %1167 = vmatprep.subr.mxu0 0.0
    %1168 = vmatpush1.xpose.msra.mxu0 0.0
    %1169 = vmatprep.subr.mxu0 0.0
    %1170 = vmatpush1.xpose.msra.mxu0 0.0
    %1171 = vmatprep.mubr.f32.mxu0 0.0
    %1172 = vmatmul.mubr.f32.gmra.mrb[0].mxu0 %v1096
    %v1173 = vpop.f32.mrb[0].mxu0
    %v1174 = vadd.f32 %v1106, %v1173
    %v1175 = vpop.f32.mrb[0].mxu0
    %1176 = vdwg.mxu0
    %v1177 = vmul.f32 %v1174, 0.5
    %v1178 = vtanh.pop %v1177
    %v1179 = vadd.f32 %v1178, 1.0
    %v1180 = vmul.f32 %v1179, 0.5
    %vm1181 = vcmask 516096
    %1182 = vst.msk [vmem:[#allocation9] sm:$0x1] %vm1181, %v1180
    // Predicated region
    $region42: #{discriminator_forward.1} parent=1 // pred_check
      _
    $region43: #{discriminator_forward.1} parent=1 // pred_check_branch
      %1184 = sbr.rel (0) target = $region45
    $region44: #{discriminator_forward.1} parent=1 // pred_region
      %s1186 = ssub.s32 16, 16
      %1187 = vsyncadd [#allocation5], %s1186
      %s1189 = sshll.u32 [#allocation9], 4
      %s1190 = int_to_ptr.vmem [resolvable:$true] %s1189
      %1192 = dma.vmem_to_hbm [thread:$0]  %s1190, 16, %s7, [#allocation5]
    $region45: #{discriminator_forward.1} parent=1 // pred_fallthru
      _
    // Predicated region
    $region46: #{discriminator_forward.1} parent=1 // pred_check
      _
    $region47: #{discriminator_forward.1} parent=1 // pred_check_branch
      %1194 = sbr.rel (0) target = $region49
    $region48: #{discriminator_forward.1} parent=1 // pred_region
      %1195 = dma.done [#allocation5], 16
    $region49: #{discriminator_forward.1} parent=1 // pred_fallthru
      _
    %1196 = vsyncpa [#allocation4], 1
    %1197 = vsyncpa [#allocation7], 1
    %1198 = vsyncpa [#allocation5], 1

</llo_original>
